<compile_context>
chip_gen: v6e
topology: v6e:2x2x1
jax: 0.10.0
libtpu: 0.0.40
codegen_flags: <defaults>
</compile_context>

<pallas_src>
import math

import jax
import jax.numpy as jnp
from jax import lax
from jax.experimental import pallas as pl
from jax.experimental.pallas import tpu as pltpu

_TWO_PI = 2.0 * math.pi
_HALF_PI = 0.5 * math.pi
_LANE_MAX = 128


def _round_up(n, m):
    return ((n + m - 1) // m) * m


def _sinusoidal_kernel(x_ref, wp_ref, out_ref):
    # x_ref:   (TB, 1)       f32 timesteps
    # wp_ref:  (2, out_dim)  f32; row 0 = [0 | 2pi*w | 2pi*w], row 1 = [0 | 0 | pi/2]
    # out_ref: (TB, out_dim) out_dtype
    x = x_ref[...]                                    # (TB, 1)
    w_row = wp_ref[0:1, :]                            # (1, out_dim)
    phase = wp_ref[1:2, :]                            # (1, out_dim)
    t = x * w_row + phase                             # (TB, out_dim) VPU outer product
    s = jnp.sin(t)                                    # single pass: sin + cos fused
    lane = lax.broadcasted_iota(jnp.int32, s.shape, dimension=1)
    # Lane 0 carries the raw timestep x.  w_row[0,0] == phase[0,0] == 0 by
    # construction (wrapper guarantees it), so the value overwritten there is
    # exactly sin(0) = 0.
    out_ref[...] = jnp.where(lane == 0, x, s).astype(out_ref.dtype)


def random_or_learned_sinusoidal_pos_emb(x, weights, *, block_b=4096,
                                         out_dtype=jnp.float32):
    """x: (B,) float timesteps; weights: (half_dim,) parameter.

    Returns (B, 1 + 2*half_dim) = [x, sin(2*pi*x*w), cos(2*pi*x*w)].
    """
    assert x.ndim == 1 and weights.ndim == 1
    b = x.shape[0]
    half_dim = weights.shape[0]
    out_dim = 1 + 2 * half_dim
    # TODO(synk): tile the lane axis if out_dim ever exceeds 128 (not needed here).
    assert out_dim <= _LANE_MAX

    # Row tile: multiple of 8 sublanes, capped at block_b.  For B >= 64 force at
    # least two grid steps so the "parallel" axis can shard across v7x's two
    # TensorCores; for tiny B use a single (possibly ragged) block.
    if b < 8:
        tb = b                                            # full-array block (allowed)
    elif b >= 64:
        tb = max(8, min(block_b, _round_up(pl.cdiv(b, 2), 8)))
    else:
        tb = max(8, min(block_b, _round_up(b, 8)))
    grid = (pl.cdiv(b, tb),)

    x2 = x.astype(jnp.float32).reshape(b, 1)

    # Resident (2, out_dim) operand.  Row 0: [0 | 2pi*w (sin lanes) | 2pi*w (cos
    # lanes)]; row 1: [0 | 0 | pi/2] (cos(t) == sin(t + pi/2)).  Lane 0 of both
    # rows stays 0 so the lane-0 select in the kernel is safe.
    w2pi = weights.astype(jnp.float32) * _TWO_PI
    wp = jnp.zeros((2, out_dim), jnp.float32)
    wp = wp.at[0, 1:1 + half_dim].set(w2pi)
    wp = wp.at[0, 1 + half_dim:out_dim].set(w2pi)
    wp = wp.at[1, 1 + half_dim:out_dim].set(_HALF_PI)

    return pl.pallas_call(
        _sinusoidal_kernel,
        out_shape=jax.ShapeDtypeStruct((b, out_dim), out_dtype),
        grid=grid,
        in_specs=[
            pl.BlockSpec((tb, 1), lambda i: (i, 0)),          # x tile (pipelined)
            pl.BlockSpec((2, out_dim), lambda i: (0, 0)),     # weights+phase (resident)
        ],
        out_specs=pl.BlockSpec((tb, out_dim), lambda i: (i, 0)),
        compiler_params=pltpu.CompilerParams(
            dimension_semantics=("parallel",)),               # megacore on v7x
    )(x2, wp)


def reference(x, weights):
    x2 = x.reshape(-1, 1).astype(jnp.float32)
    freqs = x2 * weights.reshape(1, -1) * (2.0 * math.pi)
    return jnp.concatenate((x2, jnp.sin(freqs), jnp.cos(freqs)), axis=-1)


if __name__ == "__main__":
    key = jax.random.PRNGKey(0)
    kw, kx1, kx2, kx3 = jax.random.split(key, 4)

    dim = 16                   # module's `dim` (even); half_dim = 8; out_dim = 17
    half_dim = dim // 2
    # Mirrors nn.Parameter(torch.randn(half_dim)).
    weights = jax.random.normal(kw, (half_dim,), dtype=jnp.float32)

    # Tolerance note: cos = sin(t + pi/2) and 2*pi folded into w each perturb the
    # f32 sin argument by ~1 ulp of |t|; with x <= 10 that is a few e-5 at most.
    ATOL, RTOL = 1e-4, 1e-5

    # 1) Small batch, single tile.
    b1 = 8
    x1 = jax.random.uniform(kx1, (b1,), dtype=jnp.float32) * 10.0
    out1 = jax.block_until_ready(random_or_learned_sinusoidal_pos_emb(x1, weights))
    ref1 = reference(x1, weights)
    assert out1.shape == (b1, dim + 1), out1.shape
    assert jnp.allclose(out1, ref1, atol=ATOL, rtol=RTOL), float(
        jnp.max(jnp.abs(out1 - ref1)))

    # 2) Batch not a multiple of the tile -> multi-step grid + ragged last block
    #    (tb=16, grid=(3,), rows 40..47 of the last block are masked on writeback).
    b2 = 40
    x2 = jax.random.uniform(kx2, (b2,), dtype=jnp.float32) * 10.0
    out2 = jax.block_until_ready(
        random_or_learned_sinusoidal_pos_emb(x2, weights, block_b=16))
    ref2 = reference(x2, weights)
    assert out2.shape == (b2, dim + 1), out2.shape
    assert jnp.allclose(out2, ref2, atol=ATOL, rtol=RTOL), float(
        jnp.max(jnp.abs(out2 - ref2)))

    # 3) B >= 64 path: tile capped so the "parallel" grid has 2 steps
    #    (tb=104, grid=(2,), second block ragged).
    b3 = 200
    x3 = jax.random.uniform(kx3, (b3,), dtype=jnp.float32) * 10.0
    out3 = jax.block_until_ready(random_or_learned_sinusoidal_pos_emb(x3, weights))
    ref3 = reference(x3, weights)
    assert out3.shape == (b3, dim + 1), out3.shape
    assert jnp.allclose(out3, ref3, atol=ATOL, rtol=RTOL), float(
        jnp.max(jnp.abs(out3 - ref3)))

    print("KERNEL_OK")
</pallas_src>

<mosaic_0001>
module attributes {stable_mosaic.version = 11 : i64} {
  func.func @_sinusoidal_kernel(%arg0: i32, %arg1: memref<8x1xf32, #tpu.memory_space<vmem>>, %arg2: memref<2x17xf32, #tpu.memory_space<vmem>>, %arg3: memref<8x17xf32, #tpu.memory_space<vmem>>) attributes {dimension_semantics = [#tpu.dimension_semantics<parallel>], iteration_bounds = array<i64: 1>, scalar_prefetch = 0 : i64, scratch_operands = 0 : i64, tpu.core_type = #tpu.core_type<tc>, window_params = [{transform_indices = @transform_0, window_bounds = array<i64: 8, 1>}, {pipeline_mode = #tpu.pipeline_mode<synchronous>, transform_indices = @transform_1, window_bounds = array<i64: 2, 17>}, {transform_indices = @transform_2, window_bounds = array<i64: 8, 17>}]} {
    %c0 = arith.constant 0 : index
    %c0_0 = arith.constant 0 : index
    %0 = vector.load %arg1[%c0, %c0_0] : memref<8x1xf32, #tpu.memory_space<vmem>>, vector<8x1xf32>
    %c0_1 = arith.constant 0 : index
    %c0_2 = arith.constant 0 : index
    %1 = vector.load %arg2[%c0_1, %c0_2] : memref<2x17xf32, #tpu.memory_space<vmem>>, vector<1x17xf32>
    %c1 = arith.constant 1 : index
    %c0_3 = arith.constant 0 : index
    %2 = vector.load %arg2[%c1, %c0_3] : memref<2x17xf32, #tpu.memory_space<vmem>>, vector<1x17xf32>
    %3 = vector.broadcast %0 : vector<8x1xf32> to vector<8x17xf32>
    %4 = vector.broadcast %1 : vector<1x17xf32> to vector<8x17xf32>
    %5 = arith.mulf %3, %4 : vector<8x17xf32>
    %6 = vector.broadcast %2 : vector<1x17xf32> to vector<8x17xf32>
    %7 = arith.addf %5, %6 : vector<8x17xf32>
    %8 = math.sin %7 : vector<8x17xf32>
    %9 = tpu.iota {dimensions = array<i32: 1>} : vector<8x17xi32>
    %c0_i32 = arith.constant 0 : i32
    %10 = vector.broadcast %c0_i32 : i32 to vector<8x17xi32>
    %11 = arith.cmpi eq, %9, %10 : vector<8x17xi32>
    %12 = vector.shape_cast %0 : vector<8x1xf32> to vector<8x1xf32>
    %13 = vector.broadcast %12 : vector<8x1xf32> to vector<8x17xf32>
    %14 = arith.select %11, %13, %8 : vector<8x17xi1>, vector<8x17xf32>
    %c0_4 = arith.constant 0 : index
    %c0_5 = arith.constant 0 : index
    %15 = vector.load %arg3[%c0_4, %c0_5] : memref<8x17xf32, #tpu.memory_space<vmem>>, vector<8x17xf32>
    tpu.vector_store %arg3[%c0_4, %c0_5], %14 {strides = array<i32>} : memref<8x17xf32, #tpu.memory_space<vmem>>, vector<8x17xf32>,
    return
  }
  func.func @transform_0(%arg0: i32) -> (i32, i32) {
    %c0_i32 = arith.constant 0 : i32
    %c0_i32_0 = arith.constant 0 : i32
    return %arg0, %c0_i32 : i32, i32
  }
  func.func @transform_1(%arg0: i32) -> (i32, i32) {
    %c0_i32 = arith.constant 0 : i32
    %c0_i32_0 = arith.constant 0 : i32
    %c0_i32_1 = arith.constant 0 : i32
    return %c0_i32, %c0_i32_0 : i32, i32
  }
  func.func @transform_2(%arg0: i32) -> (i32, i32) {
    %c0_i32 = arith.constant 0 : i32
    %c0_i32_0 = arith.constant 0 : i32
    return %arg0, %c0_i32 : i32, i32
  }
}

</mosaic_0001>

<llo_original>
// kernel: tpu_custom_call.1
$region0: #{tpu_custom_call.1}
  #allocation0 [shape = 'u32[]', space=smem, size = 0x4, offset = 0x4, fixed_abs, tag = 'smem constant byte address 0x4 - core index']
  #allocation1 [shape = 'u32[144,128]{1,0:T(1,128)}', space=vmem, size = 0x12000, scoped, tag = 'internal scratch']
  %s0 = inlined_call_operand.vmem [shape: f32[8,1], index: 0, kind: input, shape index: {}]
  %s1 = inlined_call_operand.vmem [shape: f32[2,17], index: 1, kind: input, shape index: {}]
  %s2 = inlined_call_operand.hbm [shape: f32[8,17], index: 2, kind: output, shape index: {}]
  %s3 = sld [smem:[#allocation0]]
  $region18: #{tpu_custom_call.1} parent=0
    _
  %s5 = ssub.s32 1, %s3
  %s6 = scalar_select 0, %s5, %s3
  $region1: #{tpu_custom_call.1} parent=0
    #allocation2 [shape = 'u8[4096]{0}', space=vmem, size = 0x1000, scoped, tag = 'output window, operand 0, single buffered']
    #allocation3 [shape = 's32[1]{0}', space=sflag, size = 0x4, scoped, tag = 'scoped memory for tpu_custom_call.1']
    %7 = vsyncpa [#allocation3], 0
    // Predicated region
    $region2: #{tpu_custom_call.1} parent=1 // pred_check
      _
    $region3: #{tpu_custom_call.1} parent=1 // pred_check_branch
      %9 = sbr.rel (0) target = $region5
    $region4: #{tpu_custom_call.1} parent=1 // pred_region
      _
    $region5: #{tpu_custom_call.1} parent=1 // pred_fallthru
      _
    // Predicated region
    $region6: #{tpu_custom_call.1} parent=1 // pred_check
      _
    $region7: #{tpu_custom_call.1} parent=1 // pred_check_branch
      %11 = sbr.rel (0) target = $region9
    $region8: #{tpu_custom_call.1} parent=1 // pred_region
      _
    $region9: #{tpu_custom_call.1} parent=1 // pred_fallthru
      _
    %v12 = vld [vmem:[%s0] sm:$0xff]
    %v13 = vld [vmem:[%s1] sm:$0x1]
    %v14 = vld [vmem:[%s1 + $0x1] sm:$0x1]
    %16 = vset.pattern.permute.xlu0 0
    %17 = vperm.xlu0 %16, %v12
    %v18 = vpop.permute.xlu0 %17
    %v20 = vlaneseq
    %v21 = vshrl.u32 %v20, 7
    %v22 = vsub.s32 0, %v21
    %v23 = vrot.slane %v13, %v22
    %v24 = vmul.f32 %v18, %v23
    %v25 = vlaneseq
    %v26 = vshrl.u32 %v25, 7
    %v27 = vsub.s32 0, %v26
    %v28 = vrot.slane %v14, %v27
    %v29 = vadd.f32 %v24, %v28
    %v30 = vand.u32 2147483647, %v29
    %vm31 = vcmp.le.f32.partialorder %v30, 0.7853982
    %vm32 = vcmp.lt.s32.totalorder %v29, 0
    %v33 = vand.u32 %v29, 2139095040
    %v34 = vshrl.u32 %v33, 23
    %v35 = vsub.s32 %v34, 127
    %v36 = vand.u32 2147483647, %v29
    %v37 = vand.u32 %v36, 8388607
    %v38 = vor.u32 %v37, 8388608
    %v39 = vsub.s32 0, %v38
    %v40 = vadd.s32 %v35, 1
    %vm41 = vcmp.gt.s32.totalorder %v40, 0
    %v42 = vsel %vm41, %v40, 0
    %v43 = vshrl.u32 %v42, 5
    %v44 = vand.u32 %v42, 31
    %v45 = vsub.s32 32, %v44
    %v46 = vshrl.u32 683565275, %v45
    %v47 = vshll.u32 683565275, %v44
    %v48 = vshrl.u32 2475754826, %v45
    %v49 = vor.u32 %v47, %v48
    %v50 = vshll.u32 2475754826, %v44
    %v51 = vshrl.u32 2131351028, %v45
    %v52 = vor.u32 %v50, %v51
    %v53 = vshll.u32 2131351028, %v44
    %v54 = vshrl.u32 2102212464, %v45
    %v55 = vor.u32 %v53, %v54
    %v56 = vshll.u32 2102212464, %v44
    %v57 = vshrl.u32 920167782, %v45
    %v58 = vor.u32 %v56, %v57
    %v59 = vshll.u32 920167782, %v44
    %v60 = vshrl.u32 1326507024, %v45
    %v61 = vor.u32 %v59, %v60
    %vm62 = vcmp.lt.s32.totalorder %v43, 1
    %vm63 = vcmp.lt.s32.totalorder %v43, 2
    %vm64 = vcmp.lt.s32.totalorder %v43, 3
    %vm65 = vcmp.lt.s32.totalorder %v43, 4
    %v66 = vsel %vm62, %v46, %v49
    %v67 = vsel %vm65, %v55, 2102212464
    %v68 = vsel %vm64, %v52, %v67
    %v69 = vsel %vm63, %v66, %v68
    %v70 = vsel %vm62, %v49, %v52
    %v71 = vsel %vm65, %v58, 920167782
    %v72 = vsel %vm64, %v55, %v71
    %v73 = vsel %vm63, %v70, %v72
    %v74 = vsel %vm62, %v52, %v55
    %v75 = vsel %vm65, %v61, 1326507024
    %v76 = vsel %vm64, %v58, %v75
    %v77 = vsel %vm63, %v74, %v76
    %v78 = vshll.u32 %v38, 8
    %v79 = vmul.u32.u64.compose %v78, %v77
    %v80 = vextract.low.u32 %v79
    %v81 = vextract.high.u32 %v79
    %v82 = vmul.u32.u64.compose %v78, %v73
    %v83 = vextract.low.u32 %v82
    %v84 = vextract.high.u32 %v82
    %v85 = vmul.u32 %v78, %v69
    %v86 = vadd.s32 %v81, %v83
    %vm87 = vc.u32 %v81, %v83
    %v88 = vadd.s32 %v84, 1
    %v89 = vsel %vm87, %v88, %v84
    %v90 = vadd.s32 %v85, %v89
    %v91 = vadd.s32 %v90, 536870912
    %v92 = vshrl.u32 %v91, 30
    %v93 = vshll.u32 %v92, 30
    %v94 = vsub.s32 %v90, %v93
    %vm95 = vcmp.lt.s32.totalorder %v94, 0
    %v96 = vsub.s32 0, %v94
    %v97 = vsel %vm95, %v96, %v94
    %v98 = vclz %v97
    %v99 = vsub.s32 %v98, 2
    %vm100 = vcmp.gt.s32.totalorder 0, %v99
    %v101 = vsel %vm100, 0, %v99
    %v102 = vsub.s32 32, %v101
    %v103 = vshll.u32 %v94, %v101
    %v104 = vshrl.u32 %v86, %v102
    %v105 = vor.u32 %v103, %v104
    %v106 = vsub.s32 4294967266, %v101
    %v107 = vadd.s32 %v106, 127
    %v108 = vshll.u32 %v107, 23
    %v109 = vor.u32 4788187, %v108
    %v110 = vand.u32 2147483647, %v109
    %v112 = vcvt.s32.f32 %v105
    %v113 = vmul.f32 %v112, %v110
    %v114 = vxor.u32 %v113, 2147483648
    %v115 = vsel %vm32, %v114, %v113
    %v116 = vsub.s32 4, %v92
    %v117 = vsel %vm32, %v116, %v92
    %v118 = vsel %vm31, %v29, %v115
    %v119 = vsel %vm31, 0, %v117
    %v120 = vcosq.f32.pop %v118
    %v121 = vsinq.f32.pop %v118
    %vm122 = vweird.f32 %v29
    %v123 = vadd.s32 %v119, 3
    %v124 = vand.u32 %v123, 3
    %vm125 = vcmp.lt.s32.totalorder %v124, 2
    %vm126 = vcmp.eq.s32.totalorder %v124, 0
    %v127 = vxor.u32 %v121, 2147483648
    %v128 = vsel %vm126, %v120, %v127
    %vm129 = vcmp.eq.s32.totalorder %v124, 2
    %v130 = vxor.u32 %v120, 2147483648
    %v131 = vsel %vm129, %v130, %v121
    %v132 = vsel %vm125, %v128, %v131
    %v133 = vsel %vm122, nan, %v132
    %v134 = vlaneseq
    %v135 = vand.u32 %v134, 127
    %vm136 = vcmp.eq.s32.totalorder %v135, 0
    %v137 = vsel %vm136, %v18, %v133
    %vm138 = vcmask 138240
    %139 = vst.msk [vmem:[#allocation2] sm:$0xff] %vm138, %v137
    // Predicated region
    $region10: #{tpu_custom_call.1} parent=1 // pred_check
      _
    $region11: #{tpu_custom_call.1} parent=1 // pred_check_branch
      %141 = sbr.rel (0) target = $region13
    $region12: #{tpu_custom_call.1} parent=1 // pred_region
      %s143 = ssub.s32 128, 128
      %144 = vsyncadd [#allocation3], %s143
      %s146 = sshll.u32 [#allocation2], 4
      %s147 = int_to_ptr.vmem [resolvable:$true] %s146
      %149 = dma.vmem_to_hbm [thread:$0]  %s147, 128, %s2, [#allocation3]
    $region13: #{tpu_custom_call.1} parent=1 // pred_fallthru
      _
    // Predicated region
    $region14: #{tpu_custom_call.1} parent=1 // pred_check
      _
    $region15: #{tpu_custom_call.1} parent=1 // pred_check_branch
      %151 = sbr.rel (0) target = $region17
    $region16: #{tpu_custom_call.1} parent=1 // pred_region
      %152 = dma.done [#allocation3], 128
    $region17: #{tpu_custom_call.1} parent=1 // pred_fallthru
      _
    %153 = vsyncpa [#allocation3], 1

</llo_original>
